<compile_context>
chip_gen: v7x
topology: tpu7x:2x2x1
jax: 0.10.0
libtpu: 0.0.40
codegen_flags: <defaults>
</compile_context>

<pallas_src>
import functools

import jax
import jax.numpy as jnp
from jax import lax
from jax.experimental import pallas as pl
from jax.experimental.pallas import tpu as pltpu


def spatial_attention_kernel(w_ref, b_ref, x_ref, o_ref, *, C, H, W):
    # w_ref: VMEM (2, 9)   conv weight; rows = input plane (avg, max), cols = kh*3+kw
    # b_ref: SMEM (1,)     conv bias
    # x_ref: VMEM (C, H*W) one batch, lane-dense
    # o_ref: VMEM (C, H*W)
    HW = H * W
    f32 = jnp.float32

    x = x_ref[...].astype(f32)                        # (C, HW) full-width load
    w2 = w_ref[...].astype(f32)                       # (2, 9)

    # Channel reductions, stacked across sublanes -> (2, HW).
    avg = jnp.sum(x, axis=0, keepdims=True) * (1.0 / C)
    mx = jnp.max(x, axis=0, keepdims=True)
    planes = jnp.concatenate([avg, mx], axis=0)       # (2, HW)

    # Row/col validity masks for SAME zero padding, built once per block.
    lane = lax.broadcasted_iota(jnp.int32, (1, HW), 1)
    if (W & (W - 1)) == 0:
        col = lane & (W - 1)
        row = lane >> (W.bit_length() - 1)
    else:
        col = lane % W
        row = lane // W
    row_ok = {-1: row >= 1, 1: row <= H - 2}          # source row r+di in [0, H)
    col_ok = {-1: col >= 1, 1: col <= W - 2}          # source col c+dj in [0, W)

    acc = jnp.zeros((2, HW), f32)
    for kh in range(3):
        for kw in range(3):
            di, dj = kh - 1, kw - 1
            d = di * W + dj                           # flattened source offset
            if d == 0:
                shifted = planes
            else:
                # out[p] = planes[p + d]; row wrap / out-of-range handled by mask.
                shifted = pltpu.roll(planes, shift=(-d) % HW, axis=1)
            mask = None
            if di != 0:
                mask = row_ok[di]
            if dj != 0:
                mask = col_ok[dj] if mask is None else (mask & col_ok[dj])
            if mask is not None:
                shifted = jnp.where(mask, shifted, 0.0)
            k = kh * 3 + kw
            wcol = w2[:, k:k + 1]                     # (2, 1) per-plane tap weight
            acc = acc + wcol * shifted                # one FMA covers both planes

    conv = acc[0:1, :] + acc[1:2, :] + b_ref[0]       # (1, HW): sum planes + bias
    attn = 0.5 * (jnp.tanh(0.5 * conv) + 1.0)         # exact sigmoid, on the EUP
    o_ref[...] = (x * attn).astype(o_ref.dtype)       # direct per-batch store


def spatial_attention(x, weight, bias):
    """x: (B, C, H, W). weight: (1, 2, 3, 3) OIHW. bias: (1,)."""
    B, C, H, W = x.shape
    HW = H * W
    # TODO(synk): pad H*W up to a multiple of 128 for arbitrary spatial sizes.
    assert HW % 128 == 0, "H*W must be a multiple of 128 for lane-dense stores"

    w2 = weight.reshape(2, 9).astype(jnp.float32)     # rows: (avg, max) plane
    b_flat = bias.reshape(-1).astype(jnp.float32)     # (1,)
    x3 = x.reshape(B, C, HW)                          # lane-dense layout

    kernel = functools.partial(spatial_attention_kernel, C=C, H=H, W=W)
    out3 = pl.pallas_call(
        kernel,
        out_shape=jax.ShapeDtypeStruct((B, C, HW), x.dtype),
        grid=(B,),
        in_specs=[
            pl.BlockSpec((2, 9), lambda b: (0, 0)),                    # weights
            pl.BlockSpec(memory_space=pltpu.MemorySpace.SMEM),         # bias
            pl.BlockSpec((pl.Squeezed(), C, HW), lambda b: (b, 0, 0)),  # x
        ],
        out_specs=pl.BlockSpec((pl.Squeezed(), C, HW), lambda b: (b, 0, 0)),
        compiler_params=pltpu.CompilerParams(
            dimension_semantics=("parallel",)),       # v7x: shard batches on 2 TCs
    )(w2, b_flat, x3)
    return out3.reshape(B, C, H, W)


def spatial_attention_ref(x, weight, bias):
    """Plain-JAX reference mirroring the PyTorch module."""
    avg = jnp.mean(x, axis=1, keepdims=True)
    mx = jnp.max(x, axis=1, keepdims=True)
    cat = jnp.concatenate([avg, mx], axis=1)          # (B, 2, H, W)
    out = lax.conv_general_dilated(
        cat, weight, window_strides=(1, 1), padding="SAME",
        dimension_numbers=("NCHW", "OIHW", "NCHW"))
    out = out + bias.reshape(1, 1, 1, 1)
    return jax.nn.sigmoid(out) * x


if __name__ == "__main__":
    key = jax.random.PRNGKey(0)
    kx, kw, kb = jax.random.split(key, 3)

    B, C, H, W = 2, 4, 16, 16
    x = jax.random.normal(kx, (B, C, H, W), dtype=jnp.float32)

    # deterministic synthetic conv parameters (shapes from nn.Conv2d(2, 1, 3))
    weight = 0.1 * jax.random.normal(kw, (1, 2, 3, 3), dtype=jnp.float32)
    bias = 0.1 * jax.random.normal(kb, (1,), dtype=jnp.float32)

    out = spatial_attention(x, weight, bias)
    out = jax.block_until_ready(out)

    ref = spatial_attention_ref(x, weight, bias)
    assert out.shape == (B, C, H, W)
    assert jnp.allclose(out, ref, atol=1e-5, rtol=1e-5), (
        float(jnp.max(jnp.abs(out - ref))))

    print("KERNEL_OK")
</pallas_src>

<mosaic_0001>
module attributes {stable_mosaic.version = 11 : i64} {
  func.func @spatial_attention_kernel(%arg0: i32, %arg1: memref<2x9xf32, #tpu.memory_space<vmem>>, %arg2: memref<1xf32, #tpu.memory_space<smem>>, %arg3: memref<1x4x256xf32, #tpu.memory_space<vmem>>, %arg4: memref<1x4x256xf32, #tpu.memory_space<vmem>>) attributes {dimension_semantics = [#tpu.dimension_semantics<parallel>], iteration_bounds = array<i64: 2>, scalar_prefetch = 0 : i64, scratch_operands = 0 : i64, tpu.core_type = #tpu.core_type<tc>, window_params = [{pipeline_mode = #tpu.pipeline_mode<synchronous>, transform_indices = @transform_0, window_bounds = array<i64: 2, 9>}, {transform_indices = @transform_1, window_bounds = array<i64: 1>}, {transform_indices = @transform_2, window_bounds = array<i64: 1, 4, 256>}, {transform_indices = @transform_3, window_bounds = array<i64: 1, 4, 256>}]} {
    %c0 = arith.constant 0 : index
    %c0_0 = arith.constant 0 : index
    %c0_1 = arith.constant 0 : index
    %0 = vector.load %arg3[%c0, %c0_0, %c0_1] : memref<1x4x256xf32, #tpu.memory_space<vmem>>, vector<1x4x256xf32>
    %1 = vector.shape_cast %0 : vector<1x4x256xf32> to vector<4x256xf32>
    %c0_2 = arith.constant 0 : index
    %c0_3 = arith.constant 0 : index
    %2 = vector.load %arg1[%c0_2, %c0_3] : memref<2x9xf32, #tpu.memory_space<vmem>>, vector<2x9xf32>
    %cst = arith.constant dense<0.000000e+00> : vector<256xf32>
    %3 = vector.multi_reduction <add>, %1, %cst [0] : vector<4x256xf32> to vector<256xf32>
    %4 = vector.shape_cast %3 : vector<256xf32> to vector<1x256xf32>
    %cst_4 = arith.constant 2.500000e-01 : f32
    %5 = vector.broadcast %cst_4 : f32 to vector<1x256xf32>
    %6 = arith.mulf %4, %5 : vector<1x256xf32>
    %cst_5 = arith.constant dense<0xFF800000> : vector<256xf32>
    %7 = vector.multi_reduction <maximumf>, %1, %cst_5 [0] : vector<4x256xf32> to vector<256xf32>
    %8 = vector.shape_cast %7 : vector<256xf32> to vector<1x256xf32>
    %9 = tpu.concatenate %6, %8 in 0 : vector<1x256xf32>, vector<1x256xf32> -> vector<2x256xf32>
    %10 = tpu.iota {dimensions = array<i32: 1>} : vector<1x256xi32>
    %c15_i32 = arith.constant 15 : i32
    %11 = vector.broadcast %c15_i32 : i32 to vector<1x256xi32>
    %12 = arith.andi %10, %11 : vector<1x256xi32>
    %c4_i32 = arith.constant 4 : i32
    %13 = vector.broadcast %c4_i32 : i32 to vector<1x256xi32>
    %14 = arith.shrsi %10, %13 : vector<1x256xi32>
    %c1_i32 = arith.constant 1 : i32
    %15 = vector.broadcast %c1_i32 : i32 to vector<1x256xi32>
    %16 = arith.cmpi sge, %14, %15 : vector<1x256xi32>
    %c14_i32 = arith.constant 14 : i32
    %17 = vector.broadcast %c14_i32 : i32 to vector<1x256xi32>
    %18 = arith.cmpi sle, %14, %17 : vector<1x256xi32>
    %c1_i32_6 = arith.constant 1 : i32
    %19 = vector.broadcast %c1_i32_6 : i32 to vector<1x256xi32>
    %20 = arith.cmpi sge, %12, %19 : vector<1x256xi32>
    %c14_i32_7 = arith.constant 14 : i32
    %21 = vector.broadcast %c14_i32_7 : i32 to vector<1x256xi32>
    %22 = arith.cmpi sle, %12, %21 : vector<1x256xi32>
    %cst_8 = arith.constant 0.000000e+00 : f32
    %23 = vector.broadcast %cst_8 : f32 to vector<2x256xf32>
    %c17_i32 = arith.constant 17 : i32
    %24 = tpu.dynamic_rotate %9 by %c17_i32 dim 1 : vector<2x256xf32>, i32 -> vector<2x256xf32>
    %25 = arith.andi %16, %20 : vector<1x256xi1>
    %cst_9 = arith.constant 0.000000e+00 : f32
    %26 = vector.shape_cast %25 : vector<1x256xi1> to vector<1x256xi1>
    %27 = vector.broadcast %26 : vector<1x256xi1> to vector<2x256xi1>
    %28 = vector.broadcast %cst_9 : f32 to vector<2x256xf32>
    %29 = arith.select %27, %24, %28 : vector<2x256xi1>, vector<2x256xf32>
    %30 = vector.extract_strided_slice %2 {offsets = [0, 0], sizes = [2, 1], strides = [1, 1]} : vector<2x9xf32> to vector<2x1xf32>
    %31 = vector.broadcast %30 : vector<2x1xf32> to vector<2x256xf32>
    %32 = arith.mulf %31, %29 : vector<2x256xf32>
    %33 = arith.addf %23, %32 : vector<2x256xf32>
    %c16_i32 = arith.constant 16 : i32
    %34 = tpu.dynamic_rotate %9 by %c16_i32 dim 1 : vector<2x256xf32>, i32 -> vector<2x256xf32>
    %cst_10 = arith.constant 0.000000e+00 : f32
    %35 = vector.shape_cast %16 : vector<1x256xi1> to vector<1x256xi1>
    %36 = vector.broadcast %35 : vector<1x256xi1> to vector<2x256xi1>
    %37 = vector.broadcast %cst_10 : f32 to vector<2x256xf32>
    %38 = arith.select %36, %34, %37 : vector<2x256xi1>, vector<2x256xf32>
    %39 = vector.extract_strided_slice %2 {offsets = [0, 1], sizes = [2, 1], strides = [1, 1]} : vector<2x9xf32> to vector<2x1xf32>
    %40 = vector.broadcast %39 : vector<2x1xf32> to vector<2x256xf32>
    %41 = arith.mulf %40, %38 : vector<2x256xf32>
    %42 = arith.addf %33, %41 : vector<2x256xf32>
    %c15_i32_11 = arith.constant 15 : i32
    %43 = tpu.dynamic_rotate %9 by %c15_i32_11 dim 1 : vector<2x256xf32>, i32 -> vector<2x256xf32>
    %44 = arith.andi %16, %22 : vector<1x256xi1>
    %cst_12 = arith.constant 0.000000e+00 : f32
    %45 = vector.shape_cast %44 : vector<1x256xi1> to vector<1x256xi1>
    %46 = vector.broadcast %45 : vector<1x256xi1> to vector<2x256xi1>
    %47 = vector.broadcast %cst_12 : f32 to vector<2x256xf32>
    %48 = arith.select %46, %43, %47 : vector<2x256xi1>, vector<2x256xf32>
    %49 = vector.extract_strided_slice %2 {offsets = [0, 2], sizes = [2, 1], strides = [1, 1]} : vector<2x9xf32> to vector<2x1xf32>
    %50 = vector.broadcast %49 : vector<2x1xf32> to vector<2x256xf32>
    %51 = arith.mulf %50, %48 : vector<2x256xf32>
    %52 = arith.addf %42, %51 : vector<2x256xf32>
    %c1_i32_13 = arith.constant 1 : i32
    %53 = tpu.dynamic_rotate %9 by %c1_i32_13 dim 1 : vector<2x256xf32>, i32 -> vector<2x256xf32>
    %cst_14 = arith.constant 0.000000e+00 : f32
    %54 = vector.shape_cast %20 : vector<1x256xi1> to vector<1x256xi1>
    %55 = vector.broadcast %54 : vector<1x256xi1> to vector<2x256xi1>
    %56 = vector.broadcast %cst_14 : f32 to vector<2x256xf32>
    %57 = arith.select %55, %53, %56 : vector<2x256xi1>, vector<2x256xf32>
    %58 = vector.extract_strided_slice %2 {offsets = [0, 3], sizes = [2, 1], strides = [1, 1]} : vector<2x9xf32> to vector<2x1xf32>
    %59 = vector.broadcast %58 : vector<2x1xf32> to vector<2x256xf32>
    %60 = arith.mulf %59, %57 : vector<2x256xf32>
    %61 = arith.addf %52, %60 : vector<2x256xf32>
    %62 = vector.extract_strided_slice %2 {offsets = [0, 4], sizes = [2, 1], strides = [1, 1]} : vector<2x9xf32> to vector<2x1xf32>
    %63 = vector.broadcast %62 : vector<2x1xf32> to vector<2x256xf32>
    %64 = arith.mulf %63, %9 : vector<2x256xf32>
    %65 = arith.addf %61, %64 : vector<2x256xf32>
    %c255_i32 = arith.constant 255 : i32
    %66 = tpu.dynamic_rotate %9 by %c255_i32 dim 1 : vector<2x256xf32>, i32 -> vector<2x256xf32>
    %cst_15 = arith.constant 0.000000e+00 : f32
    %67 = vector.shape_cast %22 : vector<1x256xi1> to vector<1x256xi1>
    %68 = vector.broadcast %67 : vector<1x256xi1> to vector<2x256xi1>
    %69 = vector.broadcast %cst_15 : f32 to vector<2x256xf32>
    %70 = arith.select %68, %66, %69 : vector<2x256xi1>, vector<2x256xf32>
    %71 = vector.extract_strided_slice %2 {offsets = [0, 5], sizes = [2, 1], strides = [1, 1]} : vector<2x9xf32> to vector<2x1xf32>
    %72 = vector.broadcast %71 : vector<2x1xf32> to vector<2x256xf32>
    %73 = arith.mulf %72, %70 : vector<2x256xf32>
    %74 = arith.addf %65, %73 : vector<2x256xf32>
    %c241_i32 = arith.constant 241 : i32
    %75 = tpu.dynamic_rotate %9 by %c241_i32 dim 1 : vector<2x256xf32>, i32 -> vector<2x256xf32>
    %76 = arith.andi %18, %20 : vector<1x256xi1>
    %cst_16 = arith.constant 0.000000e+00 : f32
    %77 = vector.shape_cast %76 : vector<1x256xi1> to vector<1x256xi1>
    %78 = vector.broadcast %77 : vector<1x256xi1> to vector<2x256xi1>
    %79 = vector.broadcast %cst_16 : f32 to vector<2x256xf32>
    %80 = arith.select %78, %75, %79 : vector<2x256xi1>, vector<2x256xf32>
    %81 = vector.extract_strided_slice %2 {offsets = [0, 6], sizes = [2, 1], strides = [1, 1]} : vector<2x9xf32> to vector<2x1xf32>
    %82 = vector.broadcast %81 : vector<2x1xf32> to vector<2x256xf32>
    %83 = arith.mulf %82, %80 : vector<2x256xf32>
    %84 = arith.addf %74, %83 : vector<2x256xf32>
    %c240_i32 = arith.constant 240 : i32
    %85 = tpu.dynamic_rotate %9 by %c240_i32 dim 1 : vector<2x256xf32>, i32 -> vector<2x256xf32>
    %cst_17 = arith.constant 0.000000e+00 : f32
    %86 = vector.shape_cast %18 : vector<1x256xi1> to vector<1x256xi1>
    %87 = vector.broadcast %86 : vector<1x256xi1> to vector<2x256xi1>
    %88 = vector.broadcast %cst_17 : f32 to vector<2x256xf32>
    %89 = arith.select %87, %85, %88 : vector<2x256xi1>, vector<2x256xf32>
    %90 = vector.extract_strided_slice %2 {offsets = [0, 7], sizes = [2, 1], strides = [1, 1]} : vector<2x9xf32> to vector<2x1xf32>
    %91 = vector.broadcast %90 : vector<2x1xf32> to vector<2x256xf32>
    %92 = arith.mulf %91, %89 : vector<2x256xf32>
    %93 = arith.addf %84, %92 : vector<2x256xf32>
    %c239_i32 = arith.constant 239 : i32
    %94 = tpu.dynamic_rotate %9 by %c239_i32 dim 1 : vector<2x256xf32>, i32 -> vector<2x256xf32>
    %95 = arith.andi %18, %22 : vector<1x256xi1>
    %cst_18 = arith.constant 0.000000e+00 : f32
    %96 = vector.shape_cast %95 : vector<1x256xi1> to vector<1x256xi1>
    %97 = vector.broadcast %96 : vector<1x256xi1> to vector<2x256xi1>
    %98 = vector.broadcast %cst_18 : f32 to vector<2x256xf32>
    %99 = arith.select %97, %94, %98 : vector<2x256xi1>, vector<2x256xf32>
    %100 = vector.extract_strided_slice %2 {offsets = [0, 8], sizes = [2, 1], strides = [1, 1]} : vector<2x9xf32> to vector<2x1xf32>
    %101 = vector.broadcast %100 : vector<2x1xf32> to vector<2x256xf32>
    %102 = arith.mulf %101, %99 : vector<2x256xf32>
    %103 = arith.addf %93, %102 : vector<2x256xf32>
    %104 = vector.extract_strided_slice %103 {offsets = [0, 0], sizes = [1, 256], strides = [1, 1]} : vector<2x256xf32> to vector<1x256xf32>
    %105 = vector.extract_strided_slice %103 {offsets = [1, 0], sizes = [1, 256], strides = [1, 1]} : vector<2x256xf32> to vector<1x256xf32>
    %106 = arith.addf %104, %105 : vector<1x256xf32>
    %c0_19 = arith.constant 0 : index
    %107 = memref.load %arg2[%c0_19] : memref<1xf32, #tpu.memory_space<smem>>
    %108 = vector.broadcast %107 : f32 to vector<1x256xf32>
    %109 = arith.addf %106, %108 : vector<1x256xf32>
    %cst_20 = arith.constant 5.000000e-01 : f32
    %110 = vector.broadcast %cst_20 : f32 to vector<1x256xf32>
    %111 = arith.mulf %110, %109 : vector<1x256xf32>
    %112 = math.tanh %111 : vector<1x256xf32>
    %cst_21 = arith.constant 1.000000e+00 : f32
    %113 = vector.broadcast %cst_21 : f32 to vector<1x256xf32>
    %114 = arith.addf %112, %113 : vector<1x256xf32>
    %cst_22 = arith.constant 5.000000e-01 : f32
    %115 = vector.broadcast %cst_22 : f32 to vector<1x256xf32>
    %116 = arith.mulf %115, %114 : vector<1x256xf32>
    %117 = vector.broadcast %116 : vector<1x256xf32> to vector<4x256xf32>
    %118 = arith.mulf %1, %117 : vector<4x256xf32>
    %c0_23 = arith.constant 0 : index
    %c0_24 = arith.constant 0 : index
    %c0_25 = arith.constant 0 : index
    %119 = vector.load %arg4[%c0_23, %c0_24, %c0_25] : memref<1x4x256xf32, #tpu.memory_space<vmem>>, vector<1x4x256xf32>
    %120 = vector.shape_cast %119 : vector<1x4x256xf32> to vector<4x256xf32>
    %121 = vector.shape_cast %118 : vector<4x256xf32> to vector<1x4x256xf32>
    tpu.vector_store %arg4[%c0_23, %c0_24, %c0_25], %121 {strides = array<i32>} : memref<1x4x256xf32, #tpu.memory_space<vmem>>, vector<1x4x256xf32>,
    return
  }
  func.func @transform_0(%arg0: i32) -> (i32, i32) {
    %c0_i32 = arith.constant 0 : i32
    %c0_i32_0 = arith.constant 0 : i32
    %c0_i32_1 = arith.constant 0 : i32
    return %c0_i32, %c0_i32_0 : i32, i32
  }
  func.func @transform_1(%arg0: i32) -> i32 {
    %c0_i32 = arith.constant 0 : i32
    %c0_i32_0 = arith.constant 0 : i32
    return %c0_i32 : i32
  }
  func.func @transform_2(%arg0: i32) -> (i32, i32, i32) {
    %c0_i32 = arith.constant 0 : i32
    %c0_i32_0 = arith.constant 0 : i32
    %c0_i32_1 = arith.constant 0 : i32
    return %arg0, %c0_i32, %c0_i32_0 : i32, i32, i32
  }
  func.func @transform_3(%arg0: i32) -> (i32, i32, i32) {
    %c0_i32 = arith.constant 0 : i32
    %c0_i32_0 = arith.constant 0 : i32
    %c0_i32_1 = arith.constant 0 : i32
    return %arg0, %c0_i32, %c0_i32_0 : i32, i32, i32
  }
}

</mosaic_0001>

<llo_original>
// kernel: tpu_custom_call.1
$region0: #{tpu_custom_call.1}
  #allocation0 [shape = 'u32[]', space=smem, size = 0x4, offset = 0x4, fixed_abs, tag = 'smem constant byte address 0x4 - core index']
  #allocation1 [shape = 'u32[144,128]{1,0:T(1,128)}', space=vmem, size = 0x12000, scoped, tag = 'internal scratch']
  #allocation2 [shape = 'f32[1]{0:T(128)S(6)}', space=smem, size = 0x200, scoped, tag = 'scoped memory for tpu_custom_call.1']
  %s0 = inlined_call_operand.vmem [shape: f32[2,9], index: 0, kind: input, shape index: {}]
  %s1 = inlined_call_operand.<no memory space> [shape: f32[1], index: 1, kind: input, shape index: {}]
  %s2 = inlined_call_operand.hbm [shape: f32[2,4,256], index: 2, kind: input, shape index: {}]
  %s3 = inlined_call_operand.hbm [shape: f32[2,4,256], index: 3, kind: output, shape index: {}]
  %s4 = sld [smem:[#allocation0]]
  $region49: #{tpu_custom_call.1} parent=0
    _
  %s6 = ssub.s32 1, %s4
  %s7 = scalar_select 0, %s6, %s4
  %8 = sst [smem:[#allocation2]] %s1
  $region1: #{tpu_custom_call.1} parent=0
    #allocation3 [shape = 'u8[8192]{0}', space=vmem, size = 0x2000, scoped, tag = 'input window, operand 2']
    #allocation4 [shape = 's32[2]{0}', space=sflag, size = 0x8, scoped, tag = 'scoped memory for tpu_custom_call.1']
    #allocation5 [shape = 's32[2]{0}', space=sflag, size = 0x8, scoped, tag = 'scoped memory for tpu_custom_call.1']
    #allocation6 [shape = 'u8[8192]{0}', space=vmem, size = 0x2000, scoped, tag = 'output window, operand 0']
    %9 = vsyncpa [#allocation4], 0
    %s10 = scalar_lea.sflag [#allocation4], 1
    %11 = vsyncpa %s10, 0
    %12 = vsyncpa [#allocation5], 0
    %s13 = scalar_lea.sflag [#allocation5], 1
    %14 = vsyncpa %s13, 0
    loop: start=0, step=1, limit=4
    $region2: #{tpu_custom_call.1} parent=1 // loop_pre_header
      _
    $region3: #{tpu_custom_call.1} parent=1 // loop_header
      %s16 = sphi 0, %s20
      %p17 = scmp.ge.s32.totalorder %s16, 4
      %s24 = sphi 0, %s24
      %s26 = sphi 0, %s24
      %s27 = sphi 0, %s26
      %s41 = sphi 0, %s27
      %s45 = sphi 0, %s45
      %s47 = sphi 0, %s45
      %s48 = sphi 0, %s47
      %s62 = sphi 0, %s48
      %s68 = sphi 0, %s70
      %s71 = sphi 0, %s68
      %s72 = sphi 0, %s71
      %s88 = sphi 0, %s72
      %s94 = sphi 0, %s96
      %s97 = sphi 0, %s94
      %s98 = sphi 0, %s97
      %s114 = sphi 0, %s98
    $region4: #{tpu_custom_call.1} parent=1 // loop_header_branch
      %19 = sbr.rel (%p17) target = $region8
    $region5: #{tpu_custom_call.1} parent=1 // loop_body
      %s21 = ssub.s32 %s16, 1
      %s22 = ssub.s32 %s16, 2
      %s23 = sadd.s32 %s16, 1
      %s25 = sadd.s32 %s24, 1
      %p28 = scmp.eq.s32.totalorder %s16, 1
      %p29 = scmp.ne.s32.totalorder %s24, %s26
      %p30 = scmp.eq.s32.totalorder %s16, 0
      %p31 = por %p29, %p30
      %p32 = scmp.ne.s32.totalorder %s24, %s26
      %p33 = scmp.eq.s32.totalorder %s21, 1
      %p34 = por %p32, %p33
      %p35 = scmp.ne.s32.totalorder %s26, %s27
      %p36 = scmp.eq.s32.totalorder %s21, 0
      %p37 = por %p35, %p36
      %p38 = scmp.ne.s32.totalorder %s26, %s27
      %p39 = scmp.eq.s32.totalorder %s22, 1
      %p40 = por %p38, %p39
      %p42 = scmp.ne.s32.totalorder %s27, %s41
      %p43 = scmp.eq.s32.totalorder %s22, 0
      %p44 = por %p42, %p43
      %s46 = sadd.s32 %s45, 1
      %p49 = scmp.eq.s32.totalorder %s16, 1
      %p50 = scmp.ne.s32.totalorder %s45, %s47
      %p51 = scmp.eq.s32.totalorder %s16, 0
      %p52 = por %p50, %p51
      %p53 = scmp.ne.s32.totalorder %s45, %s47
      %p54 = scmp.eq.s32.totalorder %s21, 1
      %p55 = por %p53, %p54
      %p56 = scmp.ne.s32.totalorder %s47, %s48
      %p57 = scmp.eq.s32.totalorder %s21, 0
      %p58 = por %p56, %p57
      %p59 = scmp.ne.s32.totalorder %s47, %s48
      %p60 = scmp.eq.s32.totalorder %s22, 1
      %p61 = por %p59, %p60
      %p63 = scmp.ne.s32.totalorder %s48, %s62
      %p64 = scmp.eq.s32.totalorder %s22, 0
      %p65 = por %p63, %p64
      %s66 = ssub.s32 %s16, %s23
      %p67 = scmp.eq.s32.totalorder %s66, 0
      %s69 = sadd.s32 %s68, 1
      %s70 = scalar_select %p67, %s68, %s69
      %p73 = pneg %p67
      %p74 = scmp.eq.s32.totalorder %s16, 1
      %p75 = por %p73, %p74
      %p76 = scmp.ne.s32.totalorder %s68, %s71
      %p77 = scmp.eq.s32.totalorder %s16, 0
      %p78 = por %p76, %p77
      %p79 = scmp.ne.s32.totalorder %s68, %s71
      %p80 = scmp.eq.s32.totalorder %s21, 1
      %p81 = por %p79, %p80
      %p82 = scmp.ne.s32.totalorder %s71, %s72
      %p83 = scmp.eq.s32.totalorder %s21, 0
      %p84 = por %p82, %p83
      %p85 = scmp.ne.s32.totalorder %s71, %s72
      %p86 = scmp.eq.s32.totalorder %s22, 1
      %p87 = por %p85, %p86
      %p89 = scmp.ne.s32.totalorder %s72, %s88
      %p90 = scmp.eq.s32.totalorder %s22, 0
      %p91 = por %p89, %p90
      %s92 = ssub.s32 %s16, %s23
      %p93 = scmp.eq.s32.totalorder %s92, 0
      %s95 = sadd.s32 %s94, 1
      %s96 = scalar_select %p93, %s94, %s95
      %p99 = pneg %p93
      %p100 = scmp.eq.s32.totalorder %s16, 1
      %p101 = por %p99, %p100
      %p102 = scmp.ne.s32.totalorder %s94, %s97
      %p103 = scmp.eq.s32.totalorder %s16, 0
      %p104 = por %p102, %p103
      %p105 = scmp.ne.s32.totalorder %s94, %s97
      %p106 = scmp.eq.s32.totalorder %s21, 1
      %p107 = por %p105, %p106
      %p108 = scmp.ne.s32.totalorder %s97, %s98
      %p109 = scmp.eq.s32.totalorder %s21, 0
      %p110 = por %p108, %p109
      %p111 = scmp.ne.s32.totalorder %s97, %s98
      %p112 = scmp.eq.s32.totalorder %s22, 1
      %p113 = por %p111, %p112
      %p115 = scmp.ne.s32.totalorder %s98, %s114
      %p116 = scmp.eq.s32.totalorder %s22, 0
      %p117 = por %p115, %p116
      %p118 = scmp.le.s32.totalorder 1, %s16
      %p119 = scmp.lt.s32.totalorder %s16, 3
      %p120 = pnand %p118, %p119
      %p121 = pneg %p120
      // Predicated region
      $region9: #{tpu_custom_call.1} parent=5 // pred_check
        _
      $region10: #{tpu_custom_call.1} parent=5 // pred_check_branch
        %123 = sbr.rel (%p120) target = $region12
      $region11: #{tpu_custom_call.1} parent=5 // pred_region
        %s124 = ssub.s32 %s16, 1
        // Predicated region
        $region13: #{tpu_custom_call.1} parent=11 // pred_check
          %p125 = pneg %p37
        $region14: #{tpu_custom_call.1} parent=11 // pred_check_branch
          %127 = sbr.rel (%p125) target = $region16
        $region15: #{tpu_custom_call.1} parent=11 // pred_region
          _
        $region16: #{tpu_custom_call.1} parent=11 // pred_fallthru
          _
        // Predicated region
        $region17: #{tpu_custom_call.1} parent=11 // pred_check
          %p128 = pneg %p58
        $region18: #{tpu_custom_call.1} parent=11 // pred_check_branch
          %130 = sbr.rel (%p128) target = $region20
        $region19: #{tpu_custom_call.1} parent=11 // pred_region
          _
        $region20: #{tpu_custom_call.1} parent=11 // pred_fallthru
          _
      $region12: #{tpu_custom_call.1} parent=5 // pred_fallthru
        _
      %p131 = scmp.lt.s32.totalorder %s16, 2
      // Predicated region
      $region21: #{tpu_custom_call.1} parent=5 // pred_check
        %p132 = pneg %p131
      $region22: #{tpu_custom_call.1} parent=5 // pred_check_branch
        %134 = sbr.rel (%p132) target = $region24
      $region23: #{tpu_custom_call.1} parent=5 // pred_region
        // Predicated region
        $region25: #{tpu_custom_call.1} parent=23 // pred_check
          %p135 = pneg %p78
        $region26: #{tpu_custom_call.1} parent=23 // pred_check_branch
          %137 = sbr.rel (%p135) target = $region28
        $region27: #{tpu_custom_call.1} parent=23 // pred_region
          %s138 = sand.u32 %s68, 1
          %s139 = scalar_lea.sflag [#allocation4], %s138
          %s140 = sand.u32 %s68, 1
          %s141 = smul.addr %s140, 8
          %s142 = scalar_lea.vmem [#allocation3], %s141
          %s144 = ssub.s32 128, 128
          %145 = vsyncadd %s139, %s144
          %s146 = smul.addr %s16, 2
          %s147 = smul.addr %s146, 64
          %s148 = scalar_lea.hbm %s2, %s147
          %s150 = sshll.u32 %s142, 4
          %s151 = int_to_ptr.vmem [resolvable:$true] %s150
          %153 = dma.hbm_to_vmem [thread:$0]  %s148, 128, %s151, %s139
        $region28: #{tpu_custom_call.1} parent=23 // pred_fallthru
          _
      $region24: #{tpu_custom_call.1} parent=5 // pred_fallthru
        _
      %p154 = scmp.le.s32.totalorder 1, %s16
      %p155 = scmp.lt.s32.totalorder %s16, 3
      %p156 = pnand %p154, %p155
      %p157 = pneg %p156
      // Predicated region
      $region29: #{tpu_custom_call.1} parent=5 // pred_check
        _
      $region30: #{tpu_custom_call.1} parent=5 // pred_check_branch
        %159 = sbr.rel (%p156) target = $region32
      $region31: #{tpu_custom_call.1} parent=5 // pred_region
        %s160 = ssub.s32 %s16, 1
        %s161 = sand.u32 %s71, 1
        %s162 = scalar_lea.sflag [#allocation4], %s161
        %s163 = sand.u32 %s71, 1
        %s164 = smul.addr %s163, 8
        %s165 = scalar_lea.vmem [#allocation3], %s164
        // Predicated region
        $region33: #{tpu_custom_call.1} parent=31 // pred_check
          %p166 = pneg %p84
        $region34: #{tpu_custom_call.1} parent=31 // pred_check_branch
          %168 = sbr.rel (%p166) target = $region36
        $region35: #{tpu_custom_call.1} parent=31 // pred_region
          %169 = dma.done %s162, 128
        $region36: #{tpu_custom_call.1} parent=31 // pred_fallthru
          _
        %p170 = pneg %p37
        %p171 = pneg %p34
        %p172 = pneg %p58
        %p173 = pneg %p55
        %s174 = sand.u32 %s71, 1
        %s175 = scalar_lea.sflag [#allocation4], %s174
        %s176 = sand.u32 %s71, 1
        %s177 = smul.addr %s176, 8
        %s178 = scalar_lea.vmem [#allocation3], %s177
        %p179 = pneg %p84
        %p180 = pneg %p81
        %p181 = pneg %p110
        %p182 = pneg %p107
        %s183 = sand.u32 %s97, 1
        %s184 = scalar_lea.sflag [#allocation5], %s183
        %s185 = sand.u32 %s97, 1
        %s186 = smul.addr %s185, 8
        %s187 = scalar_lea.vmem [#allocation6], %s186
        %v188 = vld [vmem:[%s165] sm:$0xff]
        %v189 = vld [vmem:[%s0] sm:$0x3]
        %v191 = vcombine.high %v188, %v188
        %vm193 = vcmask 1043456
        %v194 = vsel %vm193, %v188, 0.0
        %v195 = vrot.slane %v194, 4
        %v196 = vadd.f32 %v194, %v195
        %v197 = vrot.slane %v196, 2
        %v198 = vadd.f32 %v196, %v197
        %v199 = vrot.slane %v198, 1
        %v200 = vadd.f32 %v198, %v199
        %v201 = vsel %vm193, %v191, 0.0
        %v202 = vrot.slane %v201, 4
        %v203 = vadd.f32 %v201, %v202
        %v204 = vrot.slane %v203, 2
        %v205 = vadd.f32 %v203, %v204
        %v206 = vrot.slane %v205, 1
        %v207 = vadd.f32 %v205, %v206
        %v208 = vmul.f32 %v200, 0.25
        %v209 = vmul.f32 %v207, 0.25
        %v210 = vsel %vm193, %v188, -inf
        %v211 = vrot.slane %v210, 4
        %v212 = vmax.f32 %v210, %v211
        %v213 = vrot.slane %v212, 2
        %v214 = vmax.f32 %v212, %v213
        %v215 = vrot.slane %v214, 1
        %v216 = vmax.f32 %v214, %v215
        %v217 = vsel %vm193, %v191, -inf
        %v218 = vrot.slane %v217, 4
        %v219 = vmax.f32 %v217, %v218
        %v220 = vrot.slane %v219, 2
        %v221 = vmax.f32 %v219, %v220
        %v222 = vrot.slane %v221, 1
        %v223 = vmax.f32 %v221, %v222
        %vm224 = vcmask 1040384
        %v225 = vsel %vm224, %v208, %v216
        %v226 = vsel %vm224, %v209, %v223
        %v227 = vlaneseq
        %v228 = vand.u32 %v227, 127
        %v229 = vadd.s32 %v228, 128
        %v230 = vand.u32 %v228, 15
        %v231 = vand.u32 %v229, 15
        %v232 = vshra.s32 %v228, 4
        %v233 = vshra.s32 %v229, 4
        %vm234 = vcmp.ge.s32.totalorder %v232, 1
        %vm235 = vcmp.ge.s32.totalorder %v233, 1
        %vm236 = vcmp.le.s32.totalorder %v232, 14
        %vm237 = vcmp.le.s32.totalorder %v233, 14
        %vm238 = vcmp.ge.s32.totalorder %v230, 1
        %vm239 = vcmp.ge.s32.totalorder %v231, 1
        %vm240 = vcmp.le.s32.totalorder %v230, 14
        %vm241 = vcmp.le.s32.totalorder %v231, 14
        %242 = vrot.lane.b32.xlu0 %v225, 17
        %v243 = vpop.permute.xlu0 %242
        %244 = vrot.lane.b32.xlu0 %v226, 17
        %v245 = vpop.permute.xlu0 %244
        %vm246 = vcmp.lt.s32.totalorder %v228, 17
        %v247 = vsel %vm246, %v243, %v245
        %v248 = vsel %vm246, %v245, %v243
        %vm249 = vmand %vm234, %vm238
        %vm250 = vmand %vm235, %vm239
        %v251 = vsel %vm249, 1, 0
        %v252 = vsel %vm250, 1, 0
        %vm253 = vcmp.eq.s32.totalorder %v251, 1
        %vm254 = vcmp.eq.s32.totalorder %v252, 1
        %v255 = vsel %vm253, %v248, 0.0
        %v256 = vsel %vm254, %v247, 0.0
        %258 = vset.pattern.permute.xlu0 0
        %259 = vperm.xlu0 %258, %v189
        %v260 = vpop.permute.xlu0 %259
        %v262 = vmul.f32 %v260, %v255
        %v263 = vmul.f32 %v260, %v256
        %v264 = vadd.f32 %v262, 0.0
        %v265 = vadd.f32 %v263, 0.0
        %266 = vrot.lane.b32.xlu0 %v225, 16
        %v267 = vpop.permute.xlu0 %266
        %268 = vrot.lane.b32.xlu0 %v226, 16
        %v269 = vpop.permute.xlu0 %268
        %vm270 = vcmp.lt.s32.totalorder %v228, 16
        %v271 = vsel %vm270, %v267, %v269
        %v272 = vsel %vm270, %v269, %v267
        %v273 = vsel %vm234, 1, 0
        %v274 = vsel %vm235, 1, 0
        %vm275 = vcmp.eq.s32.totalorder %v273, 1
        %vm276 = vcmp.eq.s32.totalorder %v274, 1
        %v277 = vsel %vm275, %v272, 0.0
        %v278 = vsel %vm276, %v271, 0.0
        %279 = vset.pattern.permute.xlu0 1
        %280 = vperm.xlu0 %279, %v189
        %v281 = vpop.permute.xlu0 %280
        %v283 = vmul.f32 %v281, %v277
        %v284 = vmul.f32 %v281, %v278
        %v285 = vadd.f32 %v264, %v283
        %v286 = vadd.f32 %v265, %v284
        %287 = vrot.lane.b32.xlu0 %v225, 15
        %v288 = vpop.permute.xlu0 %287
        %289 = vrot.lane.b32.xlu0 %v226, 15
        %v290 = vpop.permute.xlu0 %289
        %vm291 = vcmp.lt.s32.totalorder %v228, 15
        %v292 = vsel %vm291, %v288, %v290
        %v293 = vsel %vm291, %v290, %v288
        %vm294 = vmand %vm234, %vm240
        %vm295 = vmand %vm235, %vm241
        %v296 = vsel %vm294, 1, 0
        %v297 = vsel %vm295, 1, 0
        %vm298 = vcmp.eq.s32.totalorder %v296, 1
        %vm299 = vcmp.eq.s32.totalorder %v297, 1
        %v300 = vsel %vm298, %v293, 0.0
        %v301 = vsel %vm299, %v292, 0.0
        %302 = vset.pattern.permute.xlu0 2
        %303 = vperm.xlu0 %302, %v189
        %v304 = vpop.permute.xlu0 %303
        %v306 = vmul.f32 %v304, %v300
        %v307 = vmul.f32 %v304, %v301
        %v308 = vadd.f32 %v285, %v306
        %v309 = vadd.f32 %v286, %v307
        %310 = vrot.lane.b32.xlu0 %v225, 1
        %v311 = vpop.permute.xlu0 %310
        %312 = vrot.lane.b32.xlu0 %v226, 1
        %v313 = vpop.permute.xlu0 %312
        %vm314 = vcmp.lt.s32.totalorder %v228, 1
        %v315 = vsel %vm314, %v311, %v313
        %v316 = vsel %vm314, %v313, %v311
        %v317 = vsel %vm238, 1, 0
        %v318 = vsel %vm239, 1, 0
        %vm319 = vcmp.eq.s32.totalorder %v317, 1
        %vm320 = vcmp.eq.s32.totalorder %v318, 1
        %v321 = vsel %vm319, %v316, 0.0
        %v322 = vsel %vm320, %v315, 0.0
        %323 = vset.pattern.permute.xlu0 3
        %324 = vperm.xlu0 %323, %v189
        %v325 = vpop.permute.xlu0 %324
        %v327 = vmul.f32 %v325, %v321
        %v328 = vmul.f32 %v325, %v322
        %v329 = vadd.f32 %v308, %v327
        %v330 = vadd.f32 %v309, %v328
        %331 = vset.pattern.permute.xlu0 4
        %332 = vperm.xlu0 %331, %v189
        %v333 = vpop.permute.xlu0 %332
        %v335 = vmul.f32 %v333, %v225
        %v336 = vmul.f32 %v333, %v226
        %v337 = vadd.f32 %v329, %v335
        %v338 = vadd.f32 %v330, %v336
        %339 = vrot.lane.b32.xlu0 %v225, 127
        %v340 = vpop.permute.xlu0 %339
        %341 = vrot.lane.b32.xlu0 %v226, 127
        %v342 = vpop.permute.xlu0 %341
        %vm343 = vcmp.lt.s32.totalorder %v228, 127
        %v344 = vsel %vm343, %v340, %v342
        %v345 = vsel %vm343, %v342, %v340
        %v346 = vsel %vm240, 1, 0
        %v347 = vsel %vm241, 1, 0
        %vm348 = vcmp.eq.s32.totalorder %v346, 1
        %vm349 = vcmp.eq.s32.totalorder %v347, 1
        %v350 = vsel %vm348, %v344, 0.0
        %v351 = vsel %vm349, %v345, 0.0
        %352 = vset.pattern.permute.xlu0 5
        %353 = vperm.xlu0 %352, %v189
        %v354 = vpop.permute.xlu0 %353
        %v356 = vmul.f32 %v354, %v350
        %v357 = vmul.f32 %v354, %v351
        %v358 = vadd.f32 %v337, %v356
        %v359 = vadd.f32 %v338, %v357
        %360 = vrot.lane.b32.xlu0 %v225, 113
        %v361 = vpop.permute.xlu0 %360
        %362 = vrot.lane.b32.xlu0 %v226, 113
        %v363 = vpop.permute.xlu0 %362
        %vm364 = vcmp.lt.s32.totalorder %v228, 113
        %v365 = vsel %vm364, %v361, %v363
        %v366 = vsel %vm364, %v363, %v361
        %vm367 = vmand %vm236, %vm238
        %vm368 = vmand %vm237, %vm239
        %v369 = vsel %vm367, 1, 0
        %v370 = vsel %vm368, 1, 0
        %vm371 = vcmp.eq.s32.totalorder %v369, 1
        %vm372 = vcmp.eq.s32.totalorder %v370, 1
        %v373 = vsel %vm371, %v365, 0.0
        %v374 = vsel %vm372, %v366, 0.0
        %375 = vset.pattern.permute.xlu0 6
        %376 = vperm.xlu0 %375, %v189
        %v377 = vpop.permute.xlu0 %376
        %v379 = vmul.f32 %v377, %v373
        %v380 = vmul.f32 %v377, %v374
        %v381 = vadd.f32 %v358, %v379
        %v382 = vadd.f32 %v359, %v380
        %383 = vrot.lane.b32.xlu0 %v225, 112
        %v384 = vpop.permute.xlu0 %383
        %385 = vrot.lane.b32.xlu0 %v226, 112
        %v386 = vpop.permute.xlu0 %385
        %vm387 = vcmp.lt.s32.totalorder %v228, 112
        %v388 = vsel %vm387, %v384, %v386
        %v389 = vsel %vm387, %v386, %v384
        %v390 = vsel %vm236, 1, 0
        %v391 = vsel %vm237, 1, 0
        %vm392 = vcmp.eq.s32.totalorder %v390, 1
        %vm393 = vcmp.eq.s32.totalorder %v391, 1
        %v394 = vsel %vm392, %v388, 0.0
        %v395 = vsel %vm393, %v389, 0.0
        %396 = vset.pattern.permute.xlu0 7
        %397 = vperm.xlu0 %396, %v189
        %v398 = vpop.permute.xlu0 %397
        %v400 = vmul.f32 %v398, %v394
        %v401 = vmul.f32 %v398, %v395
        %v402 = vadd.f32 %v381, %v400
        %v403 = vadd.f32 %v382, %v401
        %404 = vrot.lane.b32.xlu0 %v225, 111
        %v405 = vpop.permute.xlu0 %404
        %406 = vrot.lane.b32.xlu0 %v226, 111
        %v407 = vpop.permute.xlu0 %406
        %vm408 = vcmp.lt.s32.totalorder %v228, 111
        %v409 = vsel %vm408, %v405, %v407
        %v410 = vsel %vm408, %v407, %v405
        %vm411 = vmand %vm236, %vm240
        %vm412 = vmand %vm237, %vm241
        %v413 = vsel %vm411, 1, 0
        %v414 = vsel %vm412, 1, 0
        %vm415 = vcmp.eq.s32.totalorder %v413, 1
        %vm416 = vcmp.eq.s32.totalorder %v414, 1
        %v417 = vsel %vm415, %v409, 0.0
        %v418 = vsel %vm416, %v410, 0.0
        %419 = vset.pattern.permute.xlu0 8
        %420 = vperm.xlu0 %419, %v189
        %v421 = vpop.permute.xlu0 %420
        %v423 = vmul.f32 %v421, %v417
        %v424 = vmul.f32 %v421, %v418
        %v425 = vadd.f32 %v402, %v423
        %v426 = vadd.f32 %v403, %v424
        %v429 = vrot.slane %v425, 1
        %v430 = vrot.slane %v426, 1
        %v433 = vadd.f32 %v425, %v429
        %v434 = vadd.f32 %v426, %v430
        %s435 = sld [smem:[#allocation2]]
        %v436 = vstv %s435
        %v437 = vadd.f32 %v433, %v436
        %v438 = vadd.f32 %v434, %v436
        %v439 = vmul.f32 %v437, 0.5
        %v440 = vmul.f32 %v438, 0.5
        %v441 = vtanh.pop %v439
        %v442 = vtanh.pop %v440
        %v443 = vadd.f32 %v441, 1.0
        %v444 = vadd.f32 %v442, 1.0
        %v445 = vmul.f32 %v443, 0.5
        %v446 = vmul.f32 %v444, 0.5
        %v447 = vlaneseq
        %v448 = vshrl.u32 %v447, 7
        %v449 = vsub.s32 0, %v448
        %v450 = vrot.slane %v445, %v449
        %v451 = vlaneseq
        %v452 = vshrl.u32 %v451, 7
        %v453 = vsub.s32 0, %v452
        %v454 = vrot.slane %v446, %v453
        %v457 = vcombine.low %v450, %v454
        %v459 = vmul.f32 %v188, %v457
        %460 = vst [vmem:[%s187] sm:$0xff] %v459
        %s461 = sand.u32 %s97, 1
        %s462 = scalar_lea.sflag [#allocation5], %s461
        %s463 = sand.u32 %s97, 1
        %s464 = smul.addr %s463, 8
        %s465 = scalar_lea.vmem [#allocation6], %s464
        // Predicated region
        $region37: #{tpu_custom_call.1} parent=31 // pred_check
          %p466 = pneg %p107
        $region38: #{tpu_custom_call.1} parent=31 // pred_check_branch
          %468 = sbr.rel (%p466) target = $region40
        $region39: #{tpu_custom_call.1} parent=31 // pred_region
          %s470 = ssub.s32 128, 128
          %471 = vsyncadd %s462, %s470
          %s472 = smul.addr %s21, 2
          %s473 = smul.addr %s472, 64
          %s474 = scalar_lea.hbm %s3, %s473
          %s476 = sshll.u32 %s465, 4
          %s477 = int_to_ptr.vmem [resolvable:$true] %s476
          %479 = dma.vmem_to_hbm [thread:$0]  %s477, 128, %s474, %s462
        $region40: #{tpu_custom_call.1} parent=31 // pred_fallthru
          _
      $region32: #{tpu_custom_call.1} parent=5 // pred_fallthru
        _
      %p480 = scmp.le.s32.totalorder 2, %s16
      // Predicated region
      $region41: #{tpu_custom_call.1} parent=5 // pred_check
        %p481 = pneg %p480
      $region42: #{tpu_custom_call.1} parent=5 // pred_check_branch
        %483 = sbr.rel (%p481) target = $region44
      $region43: #{tpu_custom_call.1} parent=5 // pred_region
        %s484 = ssub.s32 %s16, 2
        // Predicated region
        $region45: #{tpu_custom_call.1} parent=43 // pred_check
          %p485 = pneg %p113
        $region46: #{tpu_custom_call.1} parent=43 // pred_check_branch
          %487 = sbr.rel (%p485) target = $region48
        $region47: #{tpu_custom_call.1} parent=43 // pred_region
          %s488 = sand.u32 %s98, 1
          %s489 = scalar_lea.sflag [#allocation5], %s488
          %s490 = sand.u32 %s98, 1
          %s491 = smul.addr %s490, 8
          %s492 = scalar_lea.vmem [#allocation6], %s491
          %493 = dma.done %s489, 128
        $region48: #{tpu_custom_call.1} parent=43 // pred_fallthru
          _
      $region44: #{tpu_custom_call.1} parent=5 // pred_fallthru
        _
    $region6: #{tpu_custom_call.1} parent=1 // loop_footer
      %s20 = sadd.s32 1, %s16
    $region7: #{tpu_custom_call.1} parent=1 // loop_footer_branch
      %15 = sbr.rel target = $region3
    $region8: #{tpu_custom_call.1} parent=1 // loop_exit
      _
    %494 = vsyncpa [#allocation4], 1
    %s495 = scalar_lea.sflag [#allocation4], 1
    %496 = vsyncpa %s495, 1
    %497 = vsyncpa [#allocation5], 1
    %s498 = scalar_lea.sflag [#allocation5], 1
    %499 = vsyncpa %s498, 1

</llo_original>
